<compile_context>
chip_gen: v7x
topology: tpu7x:2x2x1
jax: 0.10.0
libtpu: 0.0.40
codegen_flags: <defaults>
</compile_context>

<pallas_src>
import functools

import jax
import jax.numpy as jnp
from jax import lax
from jax.experimental import pallas as pl
from jax.experimental.pallas import tpu as pltpu

_LANES = 128
_TILE_BYTES = 4 * 1024 * 1024          # fast path: per-input, per-pipeline-buffer target
_GENERAL_TILE_BYTES = 2 * 1024 * 1024  # general path: per-input, per-pipeline-buffer target
_VMEM_LIMIT = 32 * 1024 * 1024         # 2 inputs x 2 buffers x 4 MiB = 16 MiB << 32 MiB


# ----------------------------------------------------------------------------------------------
# Fast path: winlen divides 128.  Signal stays flat/lane-dense; window max via lane rotations.
# ----------------------------------------------------------------------------------------------
def _wsl_fast_kernel(yh_ref, y_ref, out_ref, *, winlen, bb, lw, t_trim, nl, unroll):
    """yh_ref/y_ref: (bb, lw) input tiles, signal flat on the 128-lane axis.
       out_ref:      (bb, 128) f32 per-row-block partial sums; its (i, 0) index_map keeps it
                     VMEM-resident across the whole lane-axis (j) sweep, so it is the accumulator."""
    j = pl.program_id(1)  # lane-block index (reduction axis, "arbitrary")

    @pl.when(j == 0)
    def _init():
        out_ref[...] = jnp.zeros_like(out_ref)

    nsteps = winlen.bit_length() - 1      # winlen | 128  =>  power of two
    n_groups = lw // _LANES

    # Hoisted (once per tile, negligible vs. the per-group stream) window bookkeeping.
    # idx_lo/idx_hi run through the *same* rotate/combine network as the data, which makes the
    # "which lane holds a full, winlen-aligned window" mask independent of the pltpu.roll
    # direction convention.
    lane = lax.broadcasted_iota(jnp.int32, (bb, _LANES), 1)
    idx_lo = lane
    idx_hi = lane
    for s in range(nsteps):
        sh = _LANES - (1 << s)
        idx_lo = jnp.minimum(idx_lo, pltpu.roll(idx_lo, sh, axis=1))
        idx_hi = jnp.maximum(idx_hi, pltpu.roll(idx_hi, sh, axis=1))
    aligned = (idx_lo % winlen == 0) & (idx_hi - idx_lo == winlen - 1)

    def make_body(tail_mask):
        def body(v, partial):
            off = pl.multiple_of(v * _LANES, _LANES)
            # One (bb, 128) vreg-column group straight from the ref (keeps live vregs small).
            a = jnp.abs(yh_ref[:, pl.ds(off, _LANES)]).astype(jnp.float32)
            b = jnp.abs(y_ref[:, pl.ds(off, _LANES)]).astype(jnp.float32)
            for s in range(nsteps):
                sh = _LANES - (1 << s)
                a = jnp.maximum(a, pltpu.roll(a, sh, axis=1))
                b = jnp.maximum(b, pltpu.roll(b, sh, axis=1))
            d = jnp.abs(a - b)
            if tail_mask:
                # Only the last lane block can hold the trailing partial window / OOB lane
                # padding; interior tiles skip this index arithmetic entirely.
                start = (j * lw + off) + idx_lo
                valid = aligned & (start < t_trim)
            else:
                valid = aligned
            return partial + jnp.where(valid, d, 0.0)
        return body

    def run(tail_mask):
        return lax.fori_loop(0, n_groups, make_body(tail_mask),
                             jnp.zeros((bb, _LANES), jnp.float32), unroll=unroll)

    any_tail = nl * lw > t_trim   # trace-time constant
    if not any_tail:
        out_ref[...] += run(False)
    elif nl == 1:
        out_ref[...] += run(True)
    else:
        @pl.when(j < nl - 1)
        def _interior():
            out_ref[...] += run(False)

        @pl.when(j == nl - 1)
        def _edge():
            out_ref[...] += run(True)


def _wsl_fast(x_hat, x, winlen, t_trim):
    rows, tc = x.shape
    itemsize = x.dtype.itemsize
    sub = 16 if x.dtype == jnp.bfloat16 else 8     # bf16 packs (16, 128) per native tile
    lane_extent = (tc // _LANES) * _LANES

    if rows < sub:
        bb = rows                                  # full-extent (sub-tile) row block
    else:
        # Largest sublane-aligned row block that still hits ~_TILE_BYTES at full lane extent,
        # capped so the "parallel" row-block axis keeps >= 2 blocks (v7x has 2 TensorCores).
        bb_tile = max(sub, (_TILE_BYTES // (lane_extent * itemsize)) // sub * sub)
        bb = min((rows // sub) * sub, bb_tile, 1024)
        if rows >= 2 * sub:
            half_rows = ((rows + 1) // 2 + sub - 1) // sub * sub
            bb = min(bb, half_rows)
    nb = pl.cdiv(rows, bb)

    lw = min(lane_extent, max(_LANES, (_TILE_BYTES // (bb * itemsize)) // _LANES * _LANES))
    nl = pl.cdiv(tc, lw)
    unroll = min(8, lw // _LANES)

    kernel = functools.partial(_wsl_fast_kernel, winlen=winlen, bb=bb, lw=lw,
                               t_trim=t_trim, nl=nl, unroll=unroll)
    partials = pl.pallas_call(
        kernel,
        out_shape=jax.ShapeDtypeStruct((nb * bb, _LANES), jnp.float32),
        grid=(nb, nl),
        in_specs=[
            pl.BlockSpec((bb, lw), lambda i, j: (i, j)),
            pl.BlockSpec((bb, lw), lambda i, j: (i, j)),
        ],
        out_specs=pl.BlockSpec((bb, _LANES), lambda i, j: (i, 0)),
        compiler_params=pltpu.CompilerParams(
            dimension_semantics=("parallel", "arbitrary"),
            vmem_limit_bytes=_VMEM_LIMIT),
    )(x_hat, x)
    # Rows past `rows` (edge-block padding) never held real input; drop them before summing.
    return jnp.sum(partials[:rows])


# ----------------------------------------------------------------------------------------------
# General path: any winlen that does not divide 128 (or tiny T).  Lane-dense via one transpose.
# ----------------------------------------------------------------------------------------------
def _wsl_general_kernel(yh_ref, y_ref, out_ref, *, cw, t_out):
    """yh_ref/y_ref: (1, winlen, cw) tiles — windows lane-dense, winlen reduced over sublanes.
       out_ref:      (1, 1, cw) f32 per-batch partial sums (resident across the j sweep)."""
    j = pl.program_id(1)

    @pl.when(j == 0)
    def _init():
        out_ref[...] = jnp.zeros_like(out_ref)

    a = jnp.max(jnp.abs(yh_ref[...]).astype(jnp.float32), axis=1)  # (1, cw)
    b = jnp.max(jnp.abs(y_ref[...]).astype(jnp.float32), axis=1)   # (1, cw)
    d = jnp.abs(a - b)
    w_idx = j * cw + lax.broadcasted_iota(jnp.int32, (1, cw), 1)
    out_ref[0] += jnp.where(w_idx < t_out, d, 0.0)


def _wsl_general(x_hat, x, winlen, t_out):
    B = x.shape[0]
    itemsize = x.dtype.itemsize
    t_trim = t_out * winlen
    # One extra HBM pass (XLA transpose) so the kernel is lane-dense end-to-end: window index on
    # the 128-lane axis, the winlen max-reduction over sublanes.
    xh3 = x_hat[:, :t_trim].reshape(B, t_out, winlen).transpose(0, 2, 1)  # (B, winlen, t_out)
    x3 = x[:, :t_trim].reshape(B, t_out, winlen).transpose(0, 2, 1)

    cw_cap = max(_LANES, (_GENERAL_TILE_BYTES // (winlen * itemsize)) // _LANES * _LANES)
    cw = t_out if t_out <= cw_cap else cw_cap       # multiple of 128, or the full extent
    nw = pl.cdiv(t_out, cw)

    kernel = functools.partial(_wsl_general_kernel, cw=cw, t_out=t_out)
    partials = pl.pallas_call(
        kernel,
        out_shape=jax.ShapeDtypeStruct((B, 1, cw), jnp.float32),
        grid=(B, nw),
        in_specs=[
            pl.BlockSpec((1, winlen, cw), lambda b, j: (b, 0, j)),
            pl.BlockSpec((1, winlen, cw), lambda b, j: (b, 0, j)),
        ],
        out_specs=pl.BlockSpec((1, 1, cw), lambda b, j: (b, 0, 0)),
        compiler_params=pltpu.CompilerParams(
            dimension_semantics=("parallel", "arbitrary")),
    )(xh3, x3)
    return jnp.sum(partials)


# ----------------------------------------------------------------------------------------------
# Public wrapper (mirrors WaveformShapeLoss.forward)
# ----------------------------------------------------------------------------------------------
def waveform_shape_loss(y_hat, y, winlen):
    """Args: y_hat, y: (B, 1, T) float32/bfloat16.  Returns scalar float32 loss."""
    if y_hat.shape != y.shape:
        raise ValueError("y_hat and y must have the same shape")
    B, C, T = y.shape
    if C != 1:
        raise ValueError("expected channel dim == 1")
    t_out = T // winlen
    if t_out == 0:
        raise ValueError("T must be >= winlen")

    x_hat = y_hat.reshape(B, T)  # free contiguous squeeze of the channel dim
    x = y.reshape(B, T)

    total = None
    if _LANES % winlen == 0:
        rows, tc = B, T
        # Free contiguous row split: fills DMA sublanes for small batches and gives the
        # "parallel" row-block axis >= 2 blocks (v7x has 2 TensorCores).  Only legal when it
        # cannot cut a pooling window, i.e. winlen | (T // k).
        if rows < 64 and T % winlen == 0:
            for k in (16, 8, 4, 2):
                if (rows * k <= 128 and T % k == 0 and (T // k) % winlen == 0
                        and (T // k) >= _LANES):
                    rows, tc = rows * k, T // k
                    break
        if tc >= _LANES:
            t_trim = (tc // winlen) * winlen
            total = _wsl_fast(x_hat.reshape(rows, tc), x.reshape(rows, tc), winlen, t_trim)

    if total is None:
        # winlen does not divide 128 (or T is tiny): lane-dense transposed layout.
        total = _wsl_general(x_hat, x, winlen, t_out)

    return total / jnp.float32(B * t_out)


def _reference(y_hat, y, winlen):
    """Pure-JAX mirror of the PyTorch module."""
    B, _, T = y.shape
    t_out = T // winlen
    t_trim = t_out * winlen
    ys_hat = jnp.max(jnp.abs(y_hat[:, 0, :t_trim].astype(jnp.float32)).reshape(B, t_out, winlen), axis=-1)
    ys = jnp.max(jnp.abs(y[:, 0, :t_trim].astype(jnp.float32)).reshape(B, t_out, winlen), axis=-1)
    return jnp.mean(jnp.abs(ys_hat - ys))


if __name__ == "__main__":
    configs = [
        # (B, T, winlen, dtype)
        (2, 1024, 8, jnp.float32),    # fast path, free row split, 2 row blocks (megacore)
        (2, 1000, 8, jnp.float32),    # fast path, lane-edge masking (nl=2), rows < 8
        (9, 256, 4, jnp.float32),     # fast path, padded edge row block (sliced in wrapper)
        (2, 512, 16, jnp.bfloat16),   # fast path, bf16 stays bf16 on the wire
        (32, 2048, 8, jnp.bfloat16),  # fast path, bf16 16-sublane blocking, bb=64, 2 row blocks
        (4, 4104, 8, jnp.float32),    # fast path, interior/edge pl.when split (nl=2)
        (3, 500, 7, jnp.float32),     # general path (winlen !| 128), transposed lane-dense layout
        (2, 96, 8, jnp.float32),      # tiny-T fallback to the general path
    ]
    key = jax.random.PRNGKey(0)
    for (B, T, winlen, dtype) in configs:
        key, k1, k2 = jax.random.split(key, 3)
        y_hat = jax.random.normal(k1, (B, 1, T), dtype=dtype)
        y = jax.random.normal(k2, (B, 1, T), dtype=dtype)
        loss = waveform_shape_loss(y_hat, y, winlen)
        loss = jax.block_until_ready(loss)
        ref = _reference(y_hat, y, winlen)
        assert jnp.allclose(loss, ref, atol=1e-6, rtol=1e-4), (B, T, winlen, dtype, loss, ref)
    print("KERNEL_OK")
</pallas_src>

<mosaic_0001>
module attributes {stable_mosaic.version = 11 : i64} {
  func.func @_wsl_fast_kernel(%arg0: i32, %arg1: i32, %arg2: memref<8x128xf32, #tpu.memory_space<vmem>>, %arg3: memref<8x128xf32, #tpu.memory_space<vmem>>, %arg4: memref<8x128xf32, #tpu.memory_space<vmem>>) attributes {dimension_semantics = [#tpu.dimension_semantics<parallel>, #tpu.dimension_semantics<arbitrary>], iteration_bounds = array<i64: 2, 1>, scalar_prefetch = 0 : i64, scratch_operands = 0 : i64, tpu.core_type = #tpu.core_type<tc>, window_params = [{transform_indices = @transform_0, window_bounds = array<i64: 8, 128>}, {transform_indices = @transform_1, window_bounds = array<i64: 8, 128>}, {transform_indices = @transform_2, window_bounds = array<i64: 8, 128>}]} {
    %c0_i32 = arith.constant 0 : i32
    %0 = arith.cmpi eq, %arg1, %c0_i32 : i32
    %1 = arith.extui %0 : i1 to i32
    %c0_i32_0 = arith.constant 0 : i32
    %2 = arith.cmpi ne, %1, %c0_i32_0 : i32
    scf.if %2 {
      %cst_23 = arith.constant 0.000000e+00 : f32
      %67 = vector.broadcast %cst_23 : f32 to vector<8x128xf32>
      %c0_24 = arith.constant 0 : index
      %c0_25 = arith.constant 0 : index
      %68 = vector.load %arg4[%c0_24, %c0_25] : memref<8x128xf32, #tpu.memory_space<vmem>>, vector<8x128xf32>
      tpu.vector_store %arg4[%c0_24, %c0_25], %67 {strides = array<i32>} : memref<8x128xf32, #tpu.memory_space<vmem>>, vector<8x128xf32>,
    } else {
    }
    %3 = tpu.iota {dimensions = array<i32: 1>} : vector<8x128xi32>
    %c127_i32 = arith.constant 127 : i32
    %4 = tpu.dynamic_rotate %3 by %c127_i32 dim 1 : vector<8x128xi32>, i32 -> vector<8x128xi32>
    %5 = arith.minsi %3, %4 : vector<8x128xi32>
    %c127_i32_1 = arith.constant 127 : i32
    %6 = tpu.dynamic_rotate %3 by %c127_i32_1 dim 1 : vector<8x128xi32>, i32 -> vector<8x128xi32>
    %7 = arith.maxsi %3, %6 : vector<8x128xi32>
    %c126_i32 = arith.constant 126 : i32
    %8 = tpu.dynamic_rotate %5 by %c126_i32 dim 1 : vector<8x128xi32>, i32 -> vector<8x128xi32>
    %9 = arith.minsi %5, %8 : vector<8x128xi32>
    %c126_i32_2 = arith.constant 126 : i32
    %10 = tpu.dynamic_rotate %7 by %c126_i32_2 dim 1 : vector<8x128xi32>, i32 -> vector<8x128xi32>
    %11 = arith.maxsi %7, %10 : vector<8x128xi32>
    %c124_i32 = arith.constant 124 : i32
    %12 = tpu.dynamic_rotate %9 by %c124_i32 dim 1 : vector<8x128xi32>, i32 -> vector<8x128xi32>
    %13 = arith.minsi %9, %12 : vector<8x128xi32>
    %c124_i32_3 = arith.constant 124 : i32
    %14 = tpu.dynamic_rotate %11 by %c124_i32_3 dim 1 : vector<8x128xi32>, i32 -> vector<8x128xi32>
    %15 = arith.maxsi %11, %14 : vector<8x128xi32>
    %c8_i32 = arith.constant 8 : i32
    %c0_i32_4 = arith.constant 0 : i32
    %16 = arith.cmpi eq, %c8_i32, %c0_i32_4 : i32
    %c1_i32 = arith.constant 1 : i32
    %17 = arith.select %16, %c1_i32, %c8_i32 : i32
    %18 = vector.broadcast %17 : i32 to vector<8x128xi32>
    %19 = arith.remsi %13, %18 : vector<8x128xi32>
    %c0_i32_5 = arith.constant 0 : i32
    %20 = vector.broadcast %c0_i32_5 : i32 to vector<8x128xi32>
    %21 = arith.cmpi ne, %19, %20 : vector<8x128xi32>
    %c0_i32_6 = arith.constant 0 : i32
    %22 = vector.broadcast %c0_i32_6 : i32 to vector<8x128xi32>
    %23 = arith.cmpi slt, %19, %22 : vector<8x128xi32>
    %c0_i32_7 = arith.constant 0 : i32
    %24 = arith.cmpi slt, %17, %c0_i32_7 : i32
    %25 = vector.broadcast %24 : i1 to vector<8x128xi1>
    %26 = vector.broadcast %25 : vector<8x128xi1> to vector<8x128xi1>
    %27 = arith.xori %23, %26 : vector<8x128xi1>
    %28 = arith.andi %27, %21 : vector<8x128xi1>
    %29 = vector.broadcast %17 : i32 to vector<8x128xi32>
    %30 = arith.addi %19, %29 : vector<8x128xi32>
    %31 = arith.select %28, %30, %19 : vector<8x128xi1>, vector<8x128xi32>
    %c0_i32_8 = arith.constant 0 : i32
    %32 = vector.broadcast %c0_i32_8 : i32 to vector<8x128xi32>
    %33 = arith.cmpi eq, %31, %32 : vector<8x128xi32>
    %34 = arith.subi %15, %13 : vector<8x128xi32>
    %c7_i32 = arith.constant 7 : i32
    %35 = vector.broadcast %c7_i32 : i32 to vector<8x128xi32>
    %36 = arith.cmpi eq, %34, %35 : vector<8x128xi32>
    %37 = arith.andi %33, %36 : vector<8x128xi1>
    %c0 = arith.constant 0 : index
    %c0_9 = arith.constant 0 : index
    %38 = vector.load %arg4[%c0, %c0_9] : memref<8x128xf32, #tpu.memory_space<vmem>>, vector<8x128xf32>
    %cst = arith.constant 0.000000e+00 : f32
    %39 = vector.broadcast %cst : f32 to vector<8x128xf32>
    %c0_i32_10 = arith.constant 0 : i32
    %c128_i32 = arith.constant 128 : i32
    %40 = arith.muli %c0_i32_10, %c128_i32 : i32
    %41 = tpu.assume_multiple %40, 128 : i32
    %c0_11 = arith.constant 0 : index
    %42 = arith.index_cast %41 : i32 to index
    %43 = vector.load %arg2[%c0_11, %42] : memref<8x128xf32, #tpu.memory_space<vmem>>, vector<8x128xf32>
    %44 = math.absf %43 : vector<8x128xf32>
    %c0_12 = arith.constant 0 : index
    %45 = arith.index_cast %41 : i32 to index
    %46 = vector.load %arg3[%c0_12, %45] : memref<8x128xf32, #tpu.memory_space<vmem>>, vector<8x128xf32>
    %47 = math.absf %46 : vector<8x128xf32>
    %c127_i32_13 = arith.constant 127 : i32
    %48 = tpu.dynamic_rotate %44 by %c127_i32_13 dim 1 : vector<8x128xf32>, i32 -> vector<8x128xf32>
    %49 = arith.maximumf %44, %48 : vector<8x128xf32>
    %c127_i32_14 = arith.constant 127 : i32
    %50 = tpu.dynamic_rotate %47 by %c127_i32_14 dim 1 : vector<8x128xf32>, i32 -> vector<8x128xf32>
    %51 = arith.maximumf %47, %50 : vector<8x128xf32>
    %c126_i32_15 = arith.constant 126 : i32
    %52 = tpu.dynamic_rotate %49 by %c126_i32_15 dim 1 : vector<8x128xf32>, i32 -> vector<8x128xf32>
    %53 = arith.maximumf %49, %52 : vector<8x128xf32>
    %c126_i32_16 = arith.constant 126 : i32
    %54 = tpu.dynamic_rotate %51 by %c126_i32_16 dim 1 : vector<8x128xf32>, i32 -> vector<8x128xf32>
    %55 = arith.maximumf %51, %54 : vector<8x128xf32>
    %c124_i32_17 = arith.constant 124 : i32
    %56 = tpu.dynamic_rotate %53 by %c124_i32_17 dim 1 : vector<8x128xf32>, i32 -> vector<8x128xf32>
    %57 = arith.maximumf %53, %56 : vector<8x128xf32>
    %c124_i32_18 = arith.constant 124 : i32
    %58 = tpu.dynamic_rotate %55 by %c124_i32_18 dim 1 : vector<8x128xf32>, i32 -> vector<8x128xf32>
    %59 = arith.maximumf %55, %58 : vector<8x128xf32>
    %60 = arith.subf %57, %59 : vector<8x128xf32>
    %61 = math.absf %60 : vector<8x128xf32>
    %cst_19 = arith.constant 0.000000e+00 : f32
    %62 = vector.broadcast %cst_19 : f32 to vector<8x128xf32>
    %63 = arith.select %37, %61, %62 : vector<8x128xi1>, vector<8x128xf32>
    %64 = arith.addf %39, %63 : vector<8x128xf32>
    %c1_i32_20 = arith.constant 1 : i32
    %65 = arith.addf %38, %64 : vector<8x128xf32>
    %c0_21 = arith.constant 0 : index
    %c0_22 = arith.constant 0 : index
    %66 = vector.load %arg4[%c0_21, %c0_22] : memref<8x128xf32, #tpu.memory_space<vmem>>, vector<8x128xf32>
    tpu.vector_store %arg4[%c0_21, %c0_22], %65 {strides = array<i32>} : memref<8x128xf32, #tpu.memory_space<vmem>>, vector<8x128xf32>,
    return
  }
  func.func @transform_0(%arg0: i32, %arg1: i32) -> (i32, i32) {
    %c0_i32 = arith.constant 0 : i32
    return %arg0, %arg1 : i32, i32
  }
  func.func @transform_1(%arg0: i32, %arg1: i32) -> (i32, i32) {
    %c0_i32 = arith.constant 0 : i32
    return %arg0, %arg1 : i32, i32
  }
  func.func @transform_2(%arg0: i32, %arg1: i32) -> (i32, i32) {
    %c0_i32 = arith.constant 0 : i32
    %c0_i32_0 = arith.constant 0 : i32
    return %arg0, %c0_i32 : i32, i32
  }
}

</mosaic_0001>

<llo_original>
// kernel: tpu_custom_call.1
$region0: #{tpu_custom_call.1}
  #allocation0 [shape = 'u32[]', space=smem, size = 0x4, offset = 0x4, fixed_abs, tag = 'smem constant byte address 0x4 - core index']
  #allocation1 [shape = 'u32[144,128]{1,0:T(1,128)}', space=vmem, size = 0x12000, scoped, tag = 'internal scratch']
  %s0 = inlined_call_operand.hbm [shape: f32[16,128], index: 0, kind: input, shape index: {}]
  %s1 = inlined_call_operand.hbm [shape: f32[16,128], index: 1, kind: input, shape index: {}]
  %s2 = inlined_call_operand.hbm [shape: f32[16,128], index: 2, kind: output, shape index: {}]
  %s3 = sld [smem:[#allocation0]]
  $region53: #{tpu_custom_call.1} parent=0
    _
  %s5 = ssub.s32 1, %s3
  %s6 = scalar_select 0, %s5, %s3
  $region1: #{tpu_custom_call.1} parent=0
    #allocation2 [shape = 'u8[8192]{0}', space=vmem, size = 0x2000, scoped, tag = 'input window, operand 0']
    #allocation3 [shape = 's32[2]{0}', space=sflag, size = 0x8, scoped, tag = 'scoped memory for tpu_custom_call.1']
    #allocation4 [shape = 's32[2]{0}', space=sflag, size = 0x8, scoped, tag = 'scoped memory for tpu_custom_call.1']
    #allocation5 [shape = 'u8[8192]{0}', space=vmem, size = 0x2000, scoped, tag = 'input window, operand 1']
    #allocation6 [shape = 's32[2]{0}', space=sflag, size = 0x8, scoped, tag = 'scoped memory for tpu_custom_call.1']
    #allocation7 [shape = 'u8[8192]{0}', space=vmem, size = 0x2000, scoped, tag = 'output window, operand 0']
    %7 = vsyncpa [#allocation3], 0
    %s8 = scalar_lea.sflag [#allocation3], 1
    %9 = vsyncpa %s8, 0
    %10 = vsyncpa [#allocation6], 0
    %s11 = scalar_lea.sflag [#allocation6], 1
    %12 = vsyncpa %s11, 0
    %13 = vsyncpa [#allocation4], 0
    %s14 = scalar_lea.sflag [#allocation4], 1
    %15 = vsyncpa %s14, 0
    loop: start=0, step=1, limit=4
    $region2: #{tpu_custom_call.1} parent=1 // loop_pre_header
      _
    $region3: #{tpu_custom_call.1} parent=1 // loop_header
      %s17 = sphi 0, %s21
      %p18 = scmp.ge.s32.totalorder %s17, 4
      %s24 = sphi 0, %s36
      %s25 = sphi 0, %s32
      %s26 = sphi 0, %s24
      %s27 = sphi 0, %s25
      %s28 = sphi 0, %s26
      %s29 = sphi 0, %s27
      %s41 = sphi 0, %s43
      %s44 = sphi 0, %s41
      %s45 = sphi 0, %s44
      %s61 = sphi 0, %s45
      %s69 = sphi 0, %s71
      %s72 = sphi 0, %s69
      %s73 = sphi 0, %s72
      %s89 = sphi 0, %s73
      %s95 = sphi 0, %s97
      %s98 = sphi 0, %s95
      %s99 = sphi 0, %s98
      %s115 = sphi 0, %s99
    $region4: #{tpu_custom_call.1} parent=1 // loop_header_branch
      %20 = sbr.rel (%p18) target = $region8
    $region5: #{tpu_custom_call.1} parent=1 // loop_body
      %s22 = ssub.s32 %s17, 1
      %s23 = ssub.s32 %s17, 2
      %s30 = sadd.s32 1, %s25
      %p31 = scmp.ge.s32.totalorder %s30, 1
      %s32 = scalar_select %p31, 0, %s30
      %s33 = sadd.s32 1, %s24
      %s34 = scalar_select %p31, %s33, %s24
      %p35 = scmp.ge.s32.totalorder %s34, 2
      %s36 = scalar_select %p35, 0, %s34
      %s37 = ssub.s32 %s24, %s36
      %s38 = ssub.s32 %s25, %s32
      %s39 = sor.u32 %s37, %s38
      %p40 = scmp.eq.s32.totalorder %s39, 0
      %s42 = sadd.s32 %s41, 1
      %s43 = scalar_select %p40, %s41, %s42
      %p46 = pneg %p40
      %p47 = scmp.eq.s32.totalorder %s17, 1
      %p48 = por %p46, %p47
      %p49 = scmp.ne.s32.totalorder %s41, %s44
      %p50 = scmp.eq.s32.totalorder %s17, 0
      %p51 = por %p49, %p50
      %p52 = scmp.ne.s32.totalorder %s41, %s44
      %p53 = scmp.eq.s32.totalorder %s22, 1
      %p54 = por %p52, %p53
      %p55 = scmp.ne.s32.totalorder %s44, %s45
      %p56 = scmp.eq.s32.totalorder %s22, 0
      %p57 = por %p55, %p56
      %p58 = scmp.ne.s32.totalorder %s44, %s45
      %p59 = scmp.eq.s32.totalorder %s23, 1
      %p60 = por %p58, %p59
      %p62 = scmp.ne.s32.totalorder %s45, %s61
      %p63 = scmp.eq.s32.totalorder %s23, 0
      %p64 = por %p62, %p63
      %s65 = ssub.s32 %s24, %s36
      %s66 = ssub.s32 %s25, %s32
      %s67 = sor.u32 %s65, %s66
      %p68 = scmp.eq.s32.totalorder %s67, 0
      %s70 = sadd.s32 %s69, 1
      %s71 = scalar_select %p68, %s69, %s70
      %p74 = pneg %p68
      %p75 = scmp.eq.s32.totalorder %s17, 1
      %p76 = por %p74, %p75
      %p77 = scmp.ne.s32.totalorder %s69, %s72
      %p78 = scmp.eq.s32.totalorder %s17, 0
      %p79 = por %p77, %p78
      %p80 = scmp.ne.s32.totalorder %s69, %s72
      %p81 = scmp.eq.s32.totalorder %s22, 1
      %p82 = por %p80, %p81
      %p83 = scmp.ne.s32.totalorder %s72, %s73
      %p84 = scmp.eq.s32.totalorder %s22, 0
      %p85 = por %p83, %p84
      %p86 = scmp.ne.s32.totalorder %s72, %s73
      %p87 = scmp.eq.s32.totalorder %s23, 1
      %p88 = por %p86, %p87
      %p90 = scmp.ne.s32.totalorder %s73, %s89
      %p91 = scmp.eq.s32.totalorder %s23, 0
      %p92 = por %p90, %p91
      %s93 = ssub.s32 %s24, %s36
      %p94 = scmp.eq.s32.totalorder %s93, 0
      %s96 = sadd.s32 %s95, 1
      %s97 = scalar_select %p94, %s95, %s96
      %p100 = pneg %p94
      %p101 = scmp.eq.s32.totalorder %s17, 1
      %p102 = por %p100, %p101
      %p103 = scmp.ne.s32.totalorder %s95, %s98
      %p104 = scmp.eq.s32.totalorder %s17, 0
      %p105 = por %p103, %p104
      %p106 = scmp.ne.s32.totalorder %s95, %s98
      %p107 = scmp.eq.s32.totalorder %s22, 1
      %p108 = por %p106, %p107
      %p109 = scmp.ne.s32.totalorder %s98, %s99
      %p110 = scmp.eq.s32.totalorder %s22, 0
      %p111 = por %p109, %p110
      %p112 = scmp.ne.s32.totalorder %s98, %s99
      %p113 = scmp.eq.s32.totalorder %s23, 1
      %p114 = por %p112, %p113
      %p116 = scmp.ne.s32.totalorder %s99, %s115
      %p117 = scmp.eq.s32.totalorder %s23, 0
      %p118 = por %p116, %p117
      %p119 = scmp.le.s32.totalorder 1, %s17
      %p120 = scmp.lt.s32.totalorder %s17, 3
      %p121 = pnand %p119, %p120
      %p122 = pneg %p121
      // Predicated region
      $region9: #{tpu_custom_call.1} parent=5 // pred_check
        _
      $region10: #{tpu_custom_call.1} parent=5 // pred_check_branch
        %124 = sbr.rel (%p121) target = $region12
      $region11: #{tpu_custom_call.1} parent=5 // pred_region
        %s125 = ssub.s32 %s17, 1
      $region12: #{tpu_custom_call.1} parent=5 // pred_fallthru
        _
      %p126 = scmp.lt.s32.totalorder %s17, 2
      // Predicated region
      $region13: #{tpu_custom_call.1} parent=5 // pred_check
        %p127 = pneg %p126
      $region14: #{tpu_custom_call.1} parent=5 // pred_check_branch
        %129 = sbr.rel (%p127) target = $region16
      $region15: #{tpu_custom_call.1} parent=5 // pred_region
        // Predicated region
        $region17: #{tpu_custom_call.1} parent=15 // pred_check
          %p130 = pneg %p51
        $region18: #{tpu_custom_call.1} parent=15 // pred_check_branch
          %132 = sbr.rel (%p130) target = $region20
        $region19: #{tpu_custom_call.1} parent=15 // pred_region
          %s133 = sand.u32 %s41, 1
          %s134 = scalar_lea.sflag [#allocation3], %s133
          %s135 = sand.u32 %s41, 1
          %s136 = smul.addr %s135, 8
          %s137 = scalar_lea.vmem [#allocation2], %s136
          %s139 = ssub.s32 128, 128
          %140 = vsyncadd %s134, %s139
          %s141 = sadd.s32 %s25, %s24
          %s142 = smul.addr %s141, 128
          %s143 = scalar_lea.hbm %s0, %s142
          %s145 = sshll.u32 %s137, 4
          %s146 = int_to_ptr.vmem [resolvable:$true] %s145
          %148 = dma.hbm_to_vmem [thread:$0]  %s143, 128, %s146, %s134
        $region20: #{tpu_custom_call.1} parent=15 // pred_fallthru
          _
        // Predicated region
        $region21: #{tpu_custom_call.1} parent=15 // pred_check
          %p149 = pneg %p79
        $region22: #{tpu_custom_call.1} parent=15 // pred_check_branch
          %151 = sbr.rel (%p149) target = $region24
        $region23: #{tpu_custom_call.1} parent=15 // pred_region
          %s152 = sand.u32 %s69, 1
          %s153 = scalar_lea.sflag [#allocation6], %s152
          %s154 = sand.u32 %s69, 1
          %s155 = smul.addr %s154, 8
          %s156 = scalar_lea.vmem [#allocation5], %s155
          %s158 = ssub.s32 128, 128
          %159 = vsyncadd %s153, %s158
          %s160 = sadd.s32 %s25, %s24
          %s161 = smul.addr %s160, 128
          %s162 = scalar_lea.hbm %s1, %s161
          %s164 = sshll.u32 %s156, 4
          %s165 = int_to_ptr.vmem [resolvable:$true] %s164
          %167 = dma.hbm_to_vmem [thread:$0]  %s162, 128, %s165, %s153
        $region24: #{tpu_custom_call.1} parent=15 // pred_fallthru
          _
      $region16: #{tpu_custom_call.1} parent=5 // pred_fallthru
        _
      %p168 = scmp.le.s32.totalorder 1, %s17
      %p169 = scmp.lt.s32.totalorder %s17, 3
      %p170 = pnand %p168, %p169
      %p171 = pneg %p170
      // Predicated region
      $region25: #{tpu_custom_call.1} parent=5 // pred_check
        _
      $region26: #{tpu_custom_call.1} parent=5 // pred_check_branch
        %173 = sbr.rel (%p170) target = $region28
      $region27: #{tpu_custom_call.1} parent=5 // pred_region
        %s174 = ssub.s32 %s17, 1
        %s175 = sand.u32 %s44, 1
        %s176 = scalar_lea.sflag [#allocation3], %s175
        %s177 = sand.u32 %s44, 1
        %s178 = smul.addr %s177, 8
        %s179 = scalar_lea.vmem [#allocation2], %s178
        // Predicated region
        $region29: #{tpu_custom_call.1} parent=27 // pred_check
          %p180 = pneg %p57
        $region30: #{tpu_custom_call.1} parent=27 // pred_check_branch
          %182 = sbr.rel (%p180) target = $region32
        $region31: #{tpu_custom_call.1} parent=27 // pred_region
          %183 = dma.done %s176, 128
        $region32: #{tpu_custom_call.1} parent=27 // pred_fallthru
          _
        %s184 = sand.u32 %s72, 1
        %s185 = scalar_lea.sflag [#allocation6], %s184
        %s186 = sand.u32 %s72, 1
        %s187 = smul.addr %s186, 8
        %s188 = scalar_lea.vmem [#allocation5], %s187
        // Predicated region
        $region33: #{tpu_custom_call.1} parent=27 // pred_check
          %p189 = pneg %p85
        $region34: #{tpu_custom_call.1} parent=27 // pred_check_branch
          %191 = sbr.rel (%p189) target = $region36
        $region35: #{tpu_custom_call.1} parent=27 // pred_region
          %192 = dma.done %s185, 128
        $region36: #{tpu_custom_call.1} parent=27 // pred_fallthru
          _
        %s193 = sand.u32 %s44, 1
        %s194 = scalar_lea.sflag [#allocation3], %s193
        %s195 = sand.u32 %s44, 1
        %s196 = smul.addr %s195, 8
        %s197 = scalar_lea.vmem [#allocation2], %s196
        %p198 = pneg %p57
        %p199 = pneg %p54
        %s200 = sand.u32 %s72, 1
        %s201 = scalar_lea.sflag [#allocation6], %s200
        %s202 = sand.u32 %s72, 1
        %s203 = smul.addr %s202, 8
        %s204 = scalar_lea.vmem [#allocation5], %s203
        %p205 = pneg %p85
        %p206 = pneg %p82
        %p207 = pneg %p111
        %p208 = pneg %p108
        %s209 = sand.u32 %s98, 1
        %s210 = scalar_lea.sflag [#allocation4], %s209
        %s211 = sand.u32 %s98, 1
        %s212 = smul.addr %s211, 8
        %s213 = scalar_lea.vmem [#allocation7], %s212
        %p214 = scmp.eq.s32.totalorder %s27, 0
        // Predicated region
        $region37: #{tpu_custom_call.1} parent=27 // pred_check
          %p215 = pneg %p214
        $region38: #{tpu_custom_call.1} parent=27 // pred_check_branch
          %217 = sbr.rel (%p215) target = $region40
        $region39: #{tpu_custom_call.1} parent=27 // pred_region
          %218 = vst [vmem:[%s213] sm:$0xff] 0.0
        $region40: #{tpu_custom_call.1} parent=27 // pred_fallthru
          _
        %v219 = vlaneseq
        %v220 = vand.u32 %v219, 127
        %221 = vrot.lane.b32.xlu0 %v220, 127
        %v222 = vpop.permute.xlu0 %221
        %vm223 = vcmp.lt.s32.totalorder %v220, %v222
        %v224 = vsel %vm223, %v220, %v222
        %vm225 = vcmp.gt.s32.totalorder %v220, %v222
        %v226 = vsel %vm225, %v220, %v222
        %227 = vrot.lane.b32.xlu0 %v224, 126
        %v228 = vpop.permute.xlu0 %227
        %vm229 = vcmp.lt.s32.totalorder %v224, %v228
        %v230 = vsel %vm229, %v224, %v228
        %231 = vrot.lane.b32.xlu0 %v226, 126
        %v232 = vpop.permute.xlu0 %231
        %vm233 = vcmp.gt.s32.totalorder %v226, %v232
        %v234 = vsel %vm233, %v226, %v232
        %235 = vrot.lane.b32.xlu0 %v230, 124
        %v236 = vpop.permute.xlu0 %235
        %vm237 = vcmp.lt.s32.totalorder %v230, %v236
        %v238 = vsel %vm237, %v230, %v236
        %239 = vrot.lane.b32.xlu0 %v234, 124
        %v240 = vpop.permute.xlu0 %239
        %vm241 = vcmp.gt.s32.totalorder %v234, %v240
        %v242 = vsel %vm241, %v234, %v240
        %vm243 = vcmp.lt.s32.totalorder %v238, 0
        %v244 = vsub.s32 0, %v238
        %v245 = vsel %vm243, %v244, %v238
        %v246 = vshrl.u32 %v245, 3
        %v247 = vand.u32 %v245, 7
        %v248 = vsub.s32 0, %v247
        %v249 = vsel %vm243, %v248, %v247
        %vm250 = vcmp.ne.s32.totalorder %v249, 0
        %vm251 = vcmp.lt.s32.totalorder %v249, 0
        %vm252 = vmand %vm251, %vm250
        %v253 = vadd.s32 %v249, 8
        %v254 = vsel %vm252, %v253, %v249
        %vm255 = vcmp.eq.s32.totalorder %v254, 0
        %v256 = vsub.s32 %v242, %v238
        %vm257 = vcmp.eq.s32.totalorder %v256, 7
        %vm258 = vmand %vm255, %vm257
        %v259 = vld [vmem:[%s213] sm:$0xff]
        %v260 = vld [vmem:[%s179] sm:$0xff]
        %v261 = vand.u32 2147483647, %v260
        %v262 = vld [vmem:[%s188] sm:$0xff]
        %v263 = vand.u32 2147483647, %v262
        %264 = vrot.lane.b32.xlu0 %v261, 127
        %v265 = vpop.permute.xlu0 %264
        %v266 = vmax.f32 %v261, %v265
        %267 = vrot.lane.b32.xlu0 %v263, 127
        %v268 = vpop.permute.xlu0 %267
        %v269 = vmax.f32 %v263, %v268
        %270 = vrot.lane.b32.xlu0 %v266, 126
        %v271 = vpop.permute.xlu0 %270
        %v272 = vmax.f32 %v266, %v271
        %273 = vrot.lane.b32.xlu0 %v269, 126
        %v274 = vpop.permute.xlu0 %273
        %v275 = vmax.f32 %v269, %v274
        %276 = vrot.lane.b32.xlu0 %v272, 124
        %v277 = vpop.permute.xlu0 %276
        %v278 = vmax.f32 %v272, %v277
        %279 = vrot.lane.b32.xlu0 %v275, 124
        %v280 = vpop.permute.xlu0 %279
        %v281 = vmax.f32 %v275, %v280
        %v282 = vsub.f32 %v278, %v281
        %v283 = vand.u32 2147483647, %v282
        %v284 = vsel %vm258, %v283, 0.0
        %v285 = vadd.f32 %v284, 0.0
        %v286 = vadd.f32 %v259, %v285
        %287 = vst [vmem:[%s213] sm:$0xff] %v286
        %s288 = sand.u32 %s98, 1
        %s289 = scalar_lea.sflag [#allocation4], %s288
        %s290 = sand.u32 %s98, 1
        %s291 = smul.addr %s290, 8
        %s292 = scalar_lea.vmem [#allocation7], %s291
        // Predicated region
        $region41: #{tpu_custom_call.1} parent=27 // pred_check
          %p293 = pneg %p108
        $region42: #{tpu_custom_call.1} parent=27 // pred_check_branch
          %295 = sbr.rel (%p293) target = $region44
        $region43: #{tpu_custom_call.1} parent=27 // pred_region
          %s297 = ssub.s32 128, 128
          %298 = vsyncadd %s289, %s297
          %s299 = smul.addr %s26, 128
          %s300 = scalar_lea.hbm %s2, %s299
          %s302 = sshll.u32 %s292, 4
          %s303 = int_to_ptr.vmem [resolvable:$true] %s302
          %305 = dma.vmem_to_hbm [thread:$0]  %s303, 128, %s300, %s289
        $region44: #{tpu_custom_call.1} parent=27 // pred_fallthru
          _
      $region28: #{tpu_custom_call.1} parent=5 // pred_fallthru
        _
      %p306 = scmp.le.s32.totalorder 2, %s17
      // Predicated region
      $region45: #{tpu_custom_call.1} parent=5 // pred_check
        %p307 = pneg %p306
      $region46: #{tpu_custom_call.1} parent=5 // pred_check_branch
        %309 = sbr.rel (%p307) target = $region48
      $region47: #{tpu_custom_call.1} parent=5 // pred_region
        %s310 = ssub.s32 %s17, 2
        // Predicated region
        $region49: #{tpu_custom_call.1} parent=47 // pred_check
          %p311 = pneg %p114
        $region50: #{tpu_custom_call.1} parent=47 // pred_check_branch
          %313 = sbr.rel (%p311) target = $region52
        $region51: #{tpu_custom_call.1} parent=47 // pred_region
          %s314 = sand.u32 %s99, 1
          %s315 = scalar_lea.sflag [#allocation4], %s314
          %s316 = sand.u32 %s99, 1
          %s317 = smul.addr %s316, 8
          %s318 = scalar_lea.vmem [#allocation7], %s317
          %319 = dma.done %s315, 128
        $region52: #{tpu_custom_call.1} parent=47 // pred_fallthru
          _
      $region48: #{tpu_custom_call.1} parent=5 // pred_fallthru
        _
    $region6: #{tpu_custom_call.1} parent=1 // loop_footer
      %s21 = sadd.s32 1, %s17
    $region7: #{tpu_custom_call.1} parent=1 // loop_footer_branch
      %16 = sbr.rel target = $region3
    $region8: #{tpu_custom_call.1} parent=1 // loop_exit
      _
    %320 = vsyncpa [#allocation3], 1
    %s321 = scalar_lea.sflag [#allocation3], 1
    %322 = vsyncpa %s321, 1
    %323 = vsyncpa [#allocation6], 1
    %s324 = scalar_lea.sflag [#allocation6], 1
    %325 = vsyncpa %s324, 1
    %326 = vsyncpa [#allocation4], 1
    %s327 = scalar_lea.sflag [#allocation4], 1
    %328 = vsyncpa %s327, 1

</llo_original>
